<compile_context>
chip_gen: v6e
topology: v6e:2x2x1
jax: 0.10.0
libtpu: 0.0.40
codegen_flags: <defaults>
</compile_context>

<pallas_src>
import functools

import numpy as np
import jax
import jax.numpy as jnp
from jax.experimental import pallas as pl
from jax.experimental.pallas import tpu as pltpu


# --------------------------------------------------------------------------- #
# Kernel
# --------------------------------------------------------------------------- #
def _conv_bn_leaky_kernel(x_ref, w_ref, b_ref, o_ref, xk_ref, *,
                          KH, H, Ho, pad, stride, slope, apply_act):
    """One grid step: fused conv (single MXU dot) + folded-BN bias + LeakyReLU.

    x_ref  : (NB, H,  W*Cin)        lane-dense fused NHWC input (compute dtype)
    w_ref  : (KH*W*Cin, Wo*Cout)    width-banded, BN-scale-folded weight
    b_ref  : (1, Wo*Cout)           folded BN bias (f32)
    o_ref  : (NB, Ho, Wo*Cout)      lane-dense fused NHWC output
    xk_ref : (NB, Ho, KH*W*Cin)     VMEM scratch: height-axis im2col (halo here)
    """
    nb = x_ref.shape[0]
    wc = x_ref.shape[2]            # W*Cin
    m = o_ref.shape[2]             # Wo*Cout

    # Build the height-axis im2col directly in VMEM.  The 1-px height halo is
    # handled here with tiny zero row-fills; the width halo is already folded
    # into the banded weight, so the wrapper never materializes a padded array.
    for kh in range(KH):
        col = slice(kh * wc, (kh + 1) * wc)
        # Output rows ho with a valid input row: 0 <= ho*stride + kh - pad < H
        lo = max(0, -(-(pad - kh) // stride))                 # ceil((pad-kh)/s)
        hi = min(Ho, (H - 1 + pad - kh) // stride + 1)
        if lo >= hi:
            xk_ref[:, :, col] = jnp.zeros((nb, Ho, wc), xk_ref.dtype)
            continue
        if lo > 0:
            xk_ref[:, :lo, col] = jnp.zeros((nb, lo, wc), xk_ref.dtype)
        if hi < Ho:
            xk_ref[:, hi:, col] = jnp.zeros((nb, Ho - hi, wc), xk_ref.dtype)
        r0 = lo * stride + kh - pad
        if stride == 1:
            xk_ref[:, lo:hi, col] = x_ref[:, r0:r0 + (hi - lo), :]
        else:
            # TODO(synk): strided sublane slice path is not exercised by this
            # module config (stride=1); validate before use at stride > 1.
            xk_ref[:, lo:hi, col] = \
                x_ref[:, r0:r0 + (hi - lo - 1) * stride + 1:stride, :]

    # One MXU dot (contraction = KH*W*Cin) instead of KH small matmuls; the
    # output columns are lane-dense (Wo*Cout is a multiple of 128 here).
    xk = xk_ref[...].reshape(nb * Ho, KH * wc)
    acc = jnp.dot(xk, w_ref[...], preferred_element_type=jnp.float32)

    y = acc + b_ref[...]                        # folded BN bias, f32 epilogue
    if apply_act:
        y = jnp.maximum(y, slope * y)           # LeakyReLU, valid for 0<slope<1
    o_ref[...] = y.reshape(nb, Ho, m).astype(o_ref.dtype)


# --------------------------------------------------------------------------- #
# One-time parameter preparation (layer init) — do NOT call per forward step.
# --------------------------------------------------------------------------- #
def prepare_conv_layer_params(w_oihw, bn_scale, bn_bias, *, W, stride=1,
                              padding=None, leaky=True,
                              compute_dtype=jnp.bfloat16,
                              out_dtype=jnp.float32):
    """Fold BN into the conv weight and build the width-banded (Toeplitz)
    weight + tiled bias row, once.  For a conv without BatchNorm pass
    bn_scale=ones(Cout) and bn_bias=conv_bias (or zeros)."""
    Cout, Cin, KH, KW = w_oihw.shape
    if padding is None:
        padding = (KH - 1) // 2
    Wo = (W + 2 * padding - KW) // stride + 1

    # BN scale folded into the weights (f32 prep).
    w_hwio = jnp.transpose(w_oihw, (2, 3, 1, 0)).astype(jnp.float32)
    w_hwio = w_hwio * bn_scale.astype(jnp.float32)[None, None, None, :]

    # Width-banded expansion over the *unpadded* width.  Taps that fall in the
    # width halo are simply dropped -> zero-padding folded into the weight.
    kw_pos = jnp.arange(KW)
    wi_pos = jnp.arange(W)
    wo_pos = jnp.arange(Wo)
    sel = (wi_pos[None, :, None] ==
           (wo_pos[None, None, :] * stride + kw_pos[:, None, None] - padding)
           ).astype(jnp.float32)                                  # (KW, W, Wo)
    w_band = jnp.einsum('kpw,hkcd->hpcwd', sel, w_hwio)  # (KH, W, Cin, Wo, Cout)
    w_flat = w_band.reshape(KH * W * Cin, Wo * Cout).astype(compute_dtype)

    b_row = jnp.tile(bn_bias.astype(jnp.float32), Wo).reshape(1, Wo * Cout)

    return dict(
        w_flat=w_flat, b_row=b_row,
        W=W, Wo=Wo, Cin=Cin, Cout=Cout, KH=KH, KW=KW,
        stride=stride, padding=padding, leaky=leaky,
        compute_dtype=compute_dtype, out_dtype=out_dtype,
    )


# --------------------------------------------------------------------------- #
# Forward — production entry point works on fused NHWC (N, H, W*C) activations.
# --------------------------------------------------------------------------- #
def conv_layer_forward_fused(params, x_fused):
    """(N, H, W*Cin) -> (N, Ho, Wo*Cout), lane-dense fused NHWC layout."""
    N, H, WC = x_fused.shape
    W, Cin, Cout = params['W'], params['Cin'], params['Cout']
    KH, KW = params['KH'], params['KW']
    stride, pad = params['stride'], params['padding']
    Wo = params['Wo']
    assert WC == W * Cin, (WC, W, Cin)
    Ho = (H + 2 * pad - KH) // stride + 1
    M = Wo * Cout
    cdtype = params['compute_dtype']

    # Cast before DMA so HBM traffic is in the MXU operand dtype; in a real
    # network the previous layer already emits this dtype (no-op then).
    x_fused = x_fused.astype(cdtype)

    kernel = functools.partial(
        _conv_bn_leaky_kernel, KH=KH, H=H, Ho=Ho, pad=pad, stride=stride,
        slope=0.1, apply_act=params['leaky'])

    x_item = np.dtype(cdtype).itemsize
    o_item = np.dtype(params['out_dtype']).itemsize
    cost = pl.CostEstimate(
        flops=2 * N * Ho * Wo * Cout * Cin * KH * KW,
        transcendentals=0,
        bytes_accessed=(N * H * WC * x_item
                        + params['w_flat'].size * x_item
                        + params['b_row'].size * 4
                        + N * Ho * M * o_item))

    # Single grid step: latency-bound at these sizes; splitting across v7x's
    # two TensorCores would add per-step overhead + duplicated weight DMA.
    return pl.pallas_call(
        kernel,
        out_shape=jax.ShapeDtypeStruct((N, Ho, M), params['out_dtype']),
        grid_spec=pltpu.PrefetchScalarGridSpec(
            num_scalar_prefetch=0,
            grid=(1,),
            in_specs=[
                pl.BlockSpec((N, H, WC), lambda n: (n, 0, 0)),
                pl.BlockSpec((KH * W * Cin, M), lambda n: (0, 0)),
                pl.BlockSpec((1, M), lambda n: (0, 0)),
            ],
            out_specs=pl.BlockSpec((N, Ho, M), lambda n: (n, 0, 0)),
            scratch_shapes=[pltpu.VMEM((N, Ho, KH * WC), cdtype)],
        ),
        compiler_params=pltpu.CompilerParams(
            dimension_semantics=("arbitrary",)),
        cost_estimate=cost,
    )(x_fused, params['w_flat'], params['b_row'])


def conv_layer_forward_nchw(params, x_nchw):
    """Test-only NCHW adapter matching the PyTorch module's layout.

    TODO(synk): in a multi-layer network keep activations in the fused NHWC
    layout end-to-end; each transpose here is an extra full HBM pass.
    """
    N, Cin, H, W = x_nchw.shape
    x_fused = jnp.transpose(x_nchw, (0, 2, 3, 1)).reshape(N, H, W * Cin)
    out = conv_layer_forward_fused(params, x_fused)
    Ho = out.shape[1]
    Wo, Cout = params['Wo'], params['Cout']
    return jnp.transpose(out.reshape(N, Ho, Wo, Cout), (0, 3, 1, 2))


# --------------------------------------------------------------------------- #
# Reference + self-test
# --------------------------------------------------------------------------- #
def _reference(x_nchw, w_oihw, scale, bias, *, stride=1, padding=1, leaky=True):
    y = jax.lax.conv_general_dilated(
        x_nchw, w_oihw, window_strides=(stride, stride),
        padding=[(padding, padding), (padding, padding)],
        dimension_numbers=('NCHW', 'OIHW', 'NCHW'))
    y = y * scale[None, :, None, None] + bias[None, :, None, None]
    if leaky:
        y = jnp.where(y >= 0, y, 0.1 * y)
    return y


if __name__ == "__main__":
    # Module config: filters=8, size=3, stride=1, batch_normalize, leaky.
    N, Cin, H, W = 2, 4, 16, 16
    Cout, K, stride = 8, 3, 1
    padding = (K - 1) // 2
    eps = 1e-5

    key = jax.random.PRNGKey(0)
    kx, kw, kg, kb, km, kv = jax.random.split(key, 6)

    x = jax.random.normal(kx, (N, Cin, H, W), jnp.float32)
    # Conv2d weight (bias=False because batch_normalize is present).
    w = jax.random.normal(kw, (Cout, Cin, K, K), jnp.float32) * 0.1
    # BatchNorm2d parameters + running stats (deterministic synthetic init).
    gamma = 0.5 + jax.random.uniform(kg, (Cout,), jnp.float32)
    beta = jax.random.normal(kb, (Cout,), jnp.float32) * 0.1
    running_mean = jax.random.normal(km, (Cout,), jnp.float32) * 0.1
    running_var = 0.5 + jax.random.uniform(kv, (Cout,), jnp.float32)

    # Fold BN (eval mode) into per-channel scale/bias.
    bn_scale = gamma / jnp.sqrt(running_var + eps)
    bn_bias = beta - running_mean * bn_scale

    ref = _reference(x, w, bn_scale, bn_bias,
                     stride=stride, padding=padding, leaky=True)

    # ---- f32 MXU operands: structural correctness at tight tolerance -------
    params_f32 = prepare_conv_layer_params(
        w, bn_scale, bn_bias, W=W, stride=stride, padding=padding,
        leaky=True, compute_dtype=jnp.float32)
    fwd_f32 = jax.jit(lambda xx: conv_layer_forward_nchw(params_f32, xx))
    out_f32 = jax.block_until_ready(fwd_f32(x))
    assert out_f32.shape == (N, Cout, H, W), out_f32.shape
    assert jnp.allclose(out_f32, ref, atol=1e-4, rtol=1e-4), \
        float(jnp.max(jnp.abs(out_f32 - ref)))

    # ---- bf16 MXU operands (recommended default on v6e/v7x), f32 epilogue --
    params_bf16 = prepare_conv_layer_params(
        w, bn_scale, bn_bias, W=W, stride=stride, padding=padding,
        leaky=True, compute_dtype=jnp.bfloat16)
    fwd_bf16 = jax.jit(lambda xx: conv_layer_forward_nchw(params_bf16, xx))
    out_bf16 = jax.block_until_ready(fwd_bf16(x))
    assert out_bf16.shape == (N, Cout, H, W), out_bf16.shape
    assert jnp.allclose(out_bf16, ref, atol=3e-2, rtol=3e-2), \
        float(jnp.max(jnp.abs(out_bf16 - ref)))

    print("KERNEL_OK")
</pallas_src>

<mosaic_0001>
module attributes {stable_mosaic.version = 11 : i64} {
  func.func @_conv_bn_leaky_kernel(%arg0: i32, %arg1: memref<2x16x64xf32, #tpu.memory_space<vmem>>, %arg2: memref<192x128xf32, #tpu.memory_space<vmem>>, %arg3: memref<1x128xf32, #tpu.memory_space<vmem>>, %arg4: memref<2x16x128xf32, #tpu.memory_space<vmem>>, %arg5: memref<2x16x192xf32, #tpu.memory_space<vmem>>) attributes {dimension_semantics = [#tpu.dimension_semantics<arbitrary>], iteration_bounds = array<i64: 1>, scalar_prefetch = 0 : i64, scratch_operands = 1 : i64, tpu.core_type = #tpu.core_type<tc>, window_params = [{transform_indices = @transform_0, window_bounds = array<i64: 2, 16, 64>}, {pipeline_mode = #tpu.pipeline_mode<synchronous>, transform_indices = @transform_1, window_bounds = array<i64: 192, 128>}, {pipeline_mode = #tpu.pipeline_mode<synchronous>, transform_indices = @transform_2, window_bounds = array<i64: 1, 128>}, {transform_indices = @transform_3, window_bounds = array<i64: 2, 16, 128>}]} {
    %cst = arith.constant 0.000000e+00 : f32
    %0 = vector.broadcast %cst : f32 to vector<2x1x64xf32>
    %c0 = arith.constant 0 : index
    %c0_0 = arith.constant 0 : index
    %c0_1 = arith.constant 0 : index
    %1 = vector.load %arg5[%c0, %c0_0, %c0_1] : memref<2x16x192xf32, #tpu.memory_space<vmem>>, vector<2x1x64xf32>
    tpu.vector_store %arg5[%c0, %c0_0, %c0_1], %0 {strides = array<i32>} : memref<2x16x192xf32, #tpu.memory_space<vmem>>, vector<2x1x64xf32>,
    %c0_2 = arith.constant 0 : index
    %c0_3 = arith.constant 0 : index
    %c0_4 = arith.constant 0 : index
    %2 = vector.load %arg1[%c0_2, %c0_3, %c0_4] : memref<2x16x64xf32, #tpu.memory_space<vmem>>, vector<2x15x64xf32>
    %c0_5 = arith.constant 0 : index
    %c1 = arith.constant 1 : index
    %c0_6 = arith.constant 0 : index
    %3 = vector.load %arg5[%c0_5, %c1, %c0_6] : memref<2x16x192xf32, #tpu.memory_space<vmem>>, vector<2x15x64xf32>
    tpu.vector_store %arg5[%c0_5, %c1, %c0_6], %2 {strides = array<i32>} : memref<2x16x192xf32, #tpu.memory_space<vmem>>, vector<2x15x64xf32>,
    %c0_7 = arith.constant 0 : index
    %c0_8 = arith.constant 0 : index
    %c0_9 = arith.constant 0 : index
    %4 = vector.load %arg1[%c0_7, %c0_8, %c0_9] : memref<2x16x64xf32, #tpu.memory_space<vmem>>, vector<2x16x64xf32>
    %c0_10 = arith.constant 0 : index
    %c0_11 = arith.constant 0 : index
    %c64 = arith.constant 64 : index
    %5 = vector.load %arg5[%c0_10, %c0_11, %c64] : memref<2x16x192xf32, #tpu.memory_space<vmem>>, vector<2x16x64xf32>
    tpu.vector_store %arg5[%c0_10, %c0_11, %c64], %4 {strides = array<i32>} : memref<2x16x192xf32, #tpu.memory_space<vmem>>, vector<2x16x64xf32>,
    %cst_12 = arith.constant 0.000000e+00 : f32
    %6 = vector.broadcast %cst_12 : f32 to vector<2x1x64xf32>
    %c0_13 = arith.constant 0 : index
    %c15 = arith.constant 15 : index
    %c128 = arith.constant 128 : index
    %7 = vector.load %arg5[%c0_13, %c15, %c128] : memref<2x16x192xf32, #tpu.memory_space<vmem>>, vector<2x1x64xf32>
    tpu.vector_store %arg5[%c0_13, %c15, %c128], %6 {strides = array<i32>} : memref<2x16x192xf32, #tpu.memory_space<vmem>>, vector<2x1x64xf32>,
    %c0_14 = arith.constant 0 : index
    %c1_15 = arith.constant 1 : index
    %c0_16 = arith.constant 0 : index
    %8 = vector.load %arg1[%c0_14, %c1_15, %c0_16] : memref<2x16x64xf32, #tpu.memory_space<vmem>>, vector<2x15x64xf32>
    %c0_17 = arith.constant 0 : index
    %c0_18 = arith.constant 0 : index
    %c128_19 = arith.constant 128 : index
    %9 = vector.load %arg5[%c0_17, %c0_18, %c128_19] : memref<2x16x192xf32, #tpu.memory_space<vmem>>, vector<2x15x64xf32>
    tpu.vector_store %arg5[%c0_17, %c0_18, %c128_19], %8 {strides = array<i32>} : memref<2x16x192xf32, #tpu.memory_space<vmem>>, vector<2x15x64xf32>,
    %c0_20 = arith.constant 0 : index
    %c0_21 = arith.constant 0 : index
    %c0_22 = arith.constant 0 : index
    %10 = vector.load %arg5[%c0_20, %c0_21, %c0_22] : memref<2x16x192xf32, #tpu.memory_space<vmem>>, vector<2x16x192xf32>
    %11 = vector.shape_cast %10 : vector<2x16x192xf32> to vector<32x192xf32>
    %c0_23 = arith.constant 0 : index
    %c0_24 = arith.constant 0 : index
    %12 = vector.load %arg2[%c0_23, %c0_24] : memref<192x128xf32, #tpu.memory_space<vmem>>, vector<192x128xf32>
    %cst_25 = arith.constant dense<0.000000e+00> : vector<32x128xf32>
    %13 = tpu.matmul %11, %12, %cst_25 {dimension_numbers = #tpu.dot_dimension_numbers<[1], [0], [0], [1], [0, 0, 1, 1], [], []>} : vector<32x192xf32>, vector<192x128xf32>, vector<32x128xf32> -> vector<32x128xf32>
    %c0_26 = arith.constant 0 : index
    %c0_27 = arith.constant 0 : index
    %14 = vector.load %arg3[%c0_26, %c0_27] : memref<1x128xf32, #tpu.memory_space<vmem>>, vector<1x128xf32>
    %15 = vector.broadcast %14 : vector<1x128xf32> to vector<32x128xf32>
    %16 = arith.addf %13, %15 : vector<32x128xf32>
    %cst_28 = arith.constant 1.000000e-01 : f32
    %17 = vector.broadcast %cst_28 : f32 to vector<32x128xf32>
    %18 = arith.mulf %17, %16 : vector<32x128xf32>
    %19 = arith.maximumf %16, %18 : vector<32x128xf32>
    %20 = vector.shape_cast %19 : vector<32x128xf32> to vector<2x16x128xf32>
    %c0_29 = arith.constant 0 : index
    %c0_30 = arith.constant 0 : index
    %c0_31 = arith.constant 0 : index
    %21 = vector.load %arg4[%c0_29, %c0_30, %c0_31] : memref<2x16x128xf32, #tpu.memory_space<vmem>>, vector<2x16x128xf32>
    tpu.vector_store %arg4[%c0_29, %c0_30, %c0_31], %20 {strides = array<i32>} : memref<2x16x128xf32, #tpu.memory_space<vmem>>, vector<2x16x128xf32>,
    return
  }
  func.func @transform_0(%arg0: i32) -> (i32, i32, i32) {
    %c0_i32 = arith.constant 0 : i32
    %c0_i32_0 = arith.constant 0 : i32
    %c0_i32_1 = arith.constant 0 : i32
    return %arg0, %c0_i32, %c0_i32_0 : i32, i32, i32
  }
  func.func @transform_1(%arg0: i32) -> (i32, i32) {
    %c0_i32 = arith.constant 0 : i32
    %c0_i32_0 = arith.constant 0 : i32
    %c0_i32_1 = arith.constant 0 : i32
    return %c0_i32, %c0_i32_0 : i32, i32
  }
  func.func @transform_2(%arg0: i32) -> (i32, i32) {
    %c0_i32 = arith.constant 0 : i32
    %c0_i32_0 = arith.constant 0 : i32
    %c0_i32_1 = arith.constant 0 : i32
    return %c0_i32, %c0_i32_0 : i32, i32
  }
  func.func @transform_3(%arg0: i32) -> (i32, i32, i32) {
    %c0_i32 = arith.constant 0 : i32
    %c0_i32_0 = arith.constant 0 : i32
    %c0_i32_1 = arith.constant 0 : i32
    return %arg0, %c0_i32, %c0_i32_0 : i32, i32, i32
  }
}

</mosaic_0001>

<llo_original>
// kernel: _lambda_.1
$region0: #{_lambda_.1}
  #allocation0 [shape = 'u32[]', space=smem, size = 0x4, offset = 0x4, fixed_abs, tag = 'smem constant byte address 0x4 - core index']
  #allocation1 [shape = 'u32[144,128]{1,0:T(1,128)}', space=vmem, size = 0x12000, scoped, tag = 'internal scratch']
  #allocation2 [shape = 'f32[2,16,192]{2,1,0:T(8,128)}', space=vmem, size = 0x8000, scoped, tag = 'scratch operand']
  %s0 = inlined_call_operand.vmem [shape: f32[2,16,64], index: 0, kind: input, shape index: {}]
  %s1 = inlined_call_operand.vmem [shape: f32[192,128], index: 1, kind: input, shape index: {}]
  %s2 = inlined_call_operand.vmem [shape: f32[1,128], index: 2, kind: input, shape index: {}]
  %s3 = inlined_call_operand.vmem [shape: f32[2,16,128], index: 3, kind: output, shape index: {}]
  %s4 = sld [smem:[#allocation0]]
  $region22: #{_lambda_.1} parent=0
    _
  %s6 = ssub.s32 1, %s4
  %s7 = scalar_select 0, %s6, %s4
  // Predicated region
  $region2: #{_lambda_.1} parent=0 // pred_check
    _
  $region3: #{_lambda_.1} parent=0 // pred_check_branch
    %9 = sbr.rel (0) target = $region5
  $region4: #{_lambda_.1} parent=0 // pred_region
    _
  $region5: #{_lambda_.1} parent=0 // pred_fallthru
    _
  // Predicated region
  $region6: #{_lambda_.1} parent=0 // pred_check
    _
  $region7: #{_lambda_.1} parent=0 // pred_check_branch
    %11 = sbr.rel (0) target = $region9
  $region8: #{_lambda_.1} parent=0 // pred_region
    _
  $region9: #{_lambda_.1} parent=0 // pred_fallthru
    _
  // Predicated region
  $region10: #{_lambda_.1} parent=0 // pred_check
    _
  $region11: #{_lambda_.1} parent=0 // pred_check_branch
    %13 = sbr.rel (0) target = $region13
  $region12: #{_lambda_.1} parent=0 // pred_region
    _
  $region13: #{_lambda_.1} parent=0 // pred_fallthru
    _
  %vm14 = vcmask 516096
  %15 = vst.msk [vmem:[#allocation2] sm:$0x1] %vm14, 0.0
  %16 = vst.msk [vmem:[#allocation2 + $0x20] sm:$0x1] %vm14, 0.0
  %v17 = vld [vmem:[%s0] sm:$0xff]
  %v18 = vld [vmem:[%s0 + $0x8] sm:$0x7f]
  %v19 = vld [vmem:[%s0 + $0x10] sm:$0xff]
  %v20 = vld [vmem:[%s0 + $0x18] sm:$0x7f]
  %vm25 = vcmask 1040384
  %v26 = vrot.slane %v17, 7
  %v27 = vrot.slane %v18, 7
  %v28 = vsel %vm25, %v26, %v27
  %v29 = vrot.slane %v19, 7
  %v30 = vrot.slane %v20, 7
  %v31 = vsel %vm25, %v29, %v30
  %vm36 = vcmask 523265
  %37 = vst.msk [vmem:[#allocation2] sm:$0xfe] %vm36, %v26
  %vm38 = vcmask 523264
  %39 = vst.msk [vmem:[#allocation2 + $0x10] sm:$0xff] %vm38, %v28
  %40 = vst.msk [vmem:[#allocation2 + $0x20] sm:$0xfe] %vm36, %v29
  %41 = vst.msk [vmem:[#allocation2 + $0x30] sm:$0xff] %vm38, %v31
  %v42 = vld [vmem:[%s0] sm:$0xff]
  %v43 = vld [vmem:[%s0 + $0x8] sm:$0xff]
  %v44 = vld [vmem:[%s0 + $0x10] sm:$0xff]
  %v45 = vld [vmem:[%s0 + $0x18] sm:$0xff]
  %50 = vrot.lane.b32.xlu0 %v42, 64
  %v51 = vpop.permute.xlu0 %50
  %52 = vrot.lane.b32.xlu0 %v43, 64
  %v53 = vpop.permute.xlu0 %52
  %54 = vrot.lane.b32.xlu0 %v44, 64
  %v55 = vpop.permute.xlu0 %54
  %56 = vrot.lane.b32.xlu0 %v45, 64
  %v57 = vpop.permute.xlu0 %56
  %vm62 = vcmask 1048064
  %63 = vst.msk [vmem:[#allocation2] sm:$0xff] %vm62, %v51
  %64 = vst.msk [vmem:[#allocation2 + $0x10] sm:$0xff] %vm62, %v53
  %65 = vst.msk [vmem:[#allocation2 + $0x20] sm:$0xff] %vm62, %v55
  %66 = vst.msk [vmem:[#allocation2 + $0x30] sm:$0xff] %vm62, %v57
  %67 = vst.msk [vmem:[#allocation2 + $0x1f] sm:$0x1] %vm14, 0.0
  %68 = vst.msk [vmem:[#allocation2 + $0x3f] sm:$0x1] %vm14, 0.0
  %v69 = vld [vmem:[%s0 + $0x1] sm:$0xff]
  %v70 = vld [vmem:[%s0 + $0x9] sm:$0x7f]
  %v71 = vld [vmem:[%s0 + $0x11] sm:$0xff]
  %v72 = vld [vmem:[%s0 + $0x19] sm:$0x7f]
  %73 = vst.msk [vmem:[#allocation2 + $0x8] sm:$0xff] %vm38, %v69
  %vm74 = vcmask 522240
  %75 = vst.msk [vmem:[#allocation2 + $0x18] sm:$0x7f] %vm74, %v70
  %76 = vst.msk [vmem:[#allocation2 + $0x28] sm:$0xff] %vm38, %v71
  %77 = vst.msk [vmem:[#allocation2 + $0x38] sm:$0x7f] %vm74, %v72
  %v78 = vld [vmem:[#allocation2] sm:$0xff]
  %v79 = vld [vmem:[#allocation2 + $0x8] sm:$0xff]
  %v80 = vld [vmem:[#allocation2 + $0x10] sm:$0xff]
  %v81 = vld [vmem:[#allocation2 + $0x18] sm:$0xff]
  %v82 = vld [vmem:[#allocation2 + $0x20] sm:$0xff]
  %v83 = vld [vmem:[#allocation2 + $0x28] sm:$0xff]
  %v84 = vld [vmem:[#allocation2 + $0x30] sm:$0xff]
  %v85 = vld [vmem:[#allocation2 + $0x38] sm:$0xff]
  %v86 = vld [vmem:[%s1] sm:$0xff]
  %v87 = vld [vmem:[%s1 + $0x8] sm:$0xff]
  %v88 = vld [vmem:[%s1 + $0x10] sm:$0xff]
  %v89 = vld [vmem:[%s1 + $0x18] sm:$0xff]
  %v90 = vld [vmem:[%s1 + $0x20] sm:$0xff]
  %v91 = vld [vmem:[%s1 + $0x28] sm:$0xff]
  %v92 = vld [vmem:[%s1 + $0x30] sm:$0xff]
  %v93 = vld [vmem:[%s1 + $0x38] sm:$0xff]
  %v94 = vld [vmem:[%s1 + $0x40] sm:$0xff]
  %v95 = vld [vmem:[%s1 + $0x48] sm:$0xff]
  %v96 = vld [vmem:[%s1 + $0x50] sm:$0xff]
  %v97 = vld [vmem:[%s1 + $0x58] sm:$0xff]
  %v98 = vld [vmem:[%s1 + $0x60] sm:$0xff]
  %v99 = vld [vmem:[%s1 + $0x68] sm:$0xff]
  %v100 = vld [vmem:[%s1 + $0x70] sm:$0xff]
  %v101 = vld [vmem:[%s1 + $0x78] sm:$0xff]
  %v102 = vld [vmem:[%s1 + $0x80] sm:$0xff]
  %v103 = vld [vmem:[%s1 + $0x88] sm:$0xff]
  %v104 = vld [vmem:[%s1 + $0x90] sm:$0xff]
  %v105 = vld [vmem:[%s1 + $0x98] sm:$0xff]
  %v106 = vld [vmem:[%s1 + $0xa0] sm:$0xff]
  %v107 = vld [vmem:[%s1 + $0xa8] sm:$0xff]
  %v108 = vld [vmem:[%s1 + $0xb0] sm:$0xff]
  %v109 = vld [vmem:[%s1 + $0xb8] sm:$0xff]
  %v110 = vld [vmem:[%s2] sm:$0x1]
  %v112 = vlaneseq
  %v113 = vshrl.u32 %v112, 7
  %v114 = vsub.s32 0, %v113
  %v115 = vrot.slane %v110, %v114
  %v118 = vsel %vm38, %v79, 0
  %v121 = vsel %vm38, %v81, 0
  %v124 = vsel %vm38, %v83, 0
  %v127 = vsel %vm38, %v85, 0
  %129 = vmatprep.subr.mxu0 0.0
  %130 = vmatpush1.msra.mxu0 %v101
  %131 = vmatprep.subr.mxu0 0.0
  %132 = vmatpush1.msra.mxu0 %v100
  %133 = vmatprep.subr.mxu0 0.0
  %134 = vmatpush1.msra.mxu0 %v99
  %135 = vmatprep.subr.mxu0 0.0
  %136 = vmatpush1.msra.mxu0 %v98
  %137 = vmatprep.subr.mxu0 0.0
  %138 = vmatpush1.msra.mxu0 %v97
  %139 = vmatprep.subr.mxu0 0.0
  %140 = vmatpush1.msra.mxu0 %v96
  %141 = vmatprep.subr.mxu0 0.0
  %142 = vmatpush1.msra.mxu0 %v95
  %143 = vmatprep.subr.mxu0 0.0
  %144 = vmatpush1.msra.mxu0 %v94
  %145 = vmatprep.subr.mxu0 0.0
  %146 = vmatpush1.msra.mxu0 %v93
  %147 = vmatprep.subr.mxu0 0.0
  %148 = vmatpush1.msra.mxu0 %v92
  %149 = vmatprep.subr.mxu0 0.0
  %150 = vmatpush1.msra.mxu0 %v91
  %151 = vmatprep.subr.mxu0 0.0
  %152 = vmatpush1.msra.mxu0 %v90
  %153 = vmatprep.subr.mxu0 0.0
  %154 = vmatpush1.msra.mxu0 %v89
  %155 = vmatprep.subr.mxu0 0.0
  %156 = vmatpush1.msra.mxu0 %v88
  %157 = vmatprep.subr.mxu0 0.0
  %158 = vmatpush1.msra.mxu0 %v87
  %159 = vmatprep.subr.mxu0 0.0
  %160 = vmatpush1.msra.mxu0 %v86
  %161 = vmatprep.subr.mxu0 0.0
  %162 = vmatpush2.msra.mxu0 0.0
  %163 = vmatprep.subr.mxu0 0.0
  %164 = vmatpush2.msra.mxu0 0.0
  %165 = vmatprep.subr.mxu0 0.0
  %166 = vmatpush2.msra.mxu0 0.0
  %167 = vmatprep.subr.mxu0 0.0
  %168 = vmatpush2.msra.mxu0 0.0
  %169 = vmatprep.subr.mxu0 0.0
  %170 = vmatpush2.msra.mxu0 0.0
  %171 = vmatprep.subr.mxu0 0.0
  %172 = vmatpush2.msra.mxu0 0.0
  %173 = vmatprep.subr.mxu0 0.0
  %174 = vmatpush2.msra.mxu0 0.0
  %175 = vmatprep.subr.mxu0 0.0
  %176 = vmatpush2.msra.mxu0 0.0
  %177 = vmatprep.subr.mxu0 0.0
  %178 = vmatpush2.msra.mxu0 %v109
  %179 = vmatprep.subr.mxu0 0.0
  %180 = vmatpush2.msra.mxu0 %v108
  %181 = vmatprep.subr.mxu0 0.0
  %182 = vmatpush2.msra.mxu0 %v107
  %183 = vmatprep.subr.mxu0 0.0
  %184 = vmatpush2.msra.mxu0 %v106
  %185 = vmatprep.subr.mxu0 0.0
  %186 = vmatpush2.msra.mxu0 %v105
  %187 = vmatprep.subr.mxu0 0.0
  %188 = vmatpush2.msra.mxu0 %v104
  %189 = vmatprep.subr.mxu0 0.0
  %190 = vmatpush2.msra.mxu0 %v103
  %191 = vmatprep.subr.mxu0 0.0
  %192 = vmatpush2.msra.mxu0 %v102
  %193 = vmatprep.mubr.f32.mxu0 %v118
  %194 = vmatmul.mubr.f32.gmra.mxu0 %v78
  %v195 = vpop.f32.mrf.mxu0
  %v196 = vadd.f32 %v115, %v195
  %v197 = vpop.f32.mrf.mxu0
  %198 = vmatprep.mubr.f32.mxu0 %v121
  %199 = vmatmul.mubr.f32.gmra.mxu0 %v80
  %v200 = vpop.f32.mrf.mxu0
  %v201 = vadd.f32 %v115, %v200
  %v202 = vpop.f32.mrf.mxu0
  %203 = vmatprep.mubr.f32.mxu0 %v124
  %204 = vmatmul.mubr.f32.gmra.mxu0 %v82
  %v205 = vpop.f32.mrf.mxu0
  %v206 = vadd.f32 %v115, %v205
  %v207 = vpop.f32.mrf.mxu0
  %208 = vmatprep.mubr.f32.mxu0 %v127
  %209 = vmatmul.mubr.f32.gmra.mxu0 %v84
  %v210 = vpop.f32.mrf.mxu0
  %v211 = vadd.f32 %v115, %v210
  %v212 = vpop.f32.mrf.mxu0
  %213 = vdwg.mxu0
  %v214 = vmul.f32 %v196, 0.1
  %v215 = vmul.f32 %v201, 0.1
  %v216 = vmul.f32 %v206, 0.1
  %v217 = vmul.f32 %v211, 0.1
  %v218 = vmax.f32 %v196, %v214
  %v219 = vmax.f32 %v201, %v215
  %v220 = vmax.f32 %v206, %v216
  %v221 = vmax.f32 %v211, %v217
  %222 = vst [vmem:[%s3] sm:$0xff] %v218
  %223 = vst [vmem:[%s3 + $0x8] sm:$0xff] %v219
  %224 = vst [vmem:[%s3 + $0x10] sm:$0xff] %v220
  %225 = vst [vmem:[%s3 + $0x18] sm:$0xff] %v221
  // Predicated region
  $region14: #{_lambda_.1} parent=0 // pred_check
    _
  $region15: #{_lambda_.1} parent=0 // pred_check_branch
    %227 = sbr.rel (0) target = $region17
  $region16: #{_lambda_.1} parent=0 // pred_region
    _
  $region17: #{_lambda_.1} parent=0 // pred_fallthru
    _
  // Predicated region
  $region18: #{_lambda_.1} parent=0 // pred_check
    _
  $region19: #{_lambda_.1} parent=0 // pred_check_branch
    %229 = sbr.rel (0) target = $region21
  $region20: #{_lambda_.1} parent=0 // pred_region
    _
  $region21: #{_lambda_.1} parent=0 // pred_fallthru
    _

</llo_original>
